<compile_context>
chip_gen: v6e
topology: v6e:2x2x1
jax: 0.10.0
libtpu: 0.0.40
codegen_flags: <defaults>
</compile_context>

<pallas_src>
import jax
import jax.numpy as jnp
from jax.experimental import pallas as pl
from jax.experimental.pallas import tpu as pltpu


# ---------------------------------------------------------------------------
# Kernels
# ---------------------------------------------------------------------------

def _resident_kernel(a_ref, x_ref, w1_ref, b1_ref, w2_ref, b2_ref, o_ref):
    """Whole (H,H) weights resident in VMEM; one batch tile per grid step.

    a_ref  : (1,1)  f32 SMEM  -- PReLU slope
    x_ref  : (bm,H) f32 VMEM
    w1_ref : (H,H)  bf16 VMEM -- (in,out) layout
    b1_ref : (1,H)  f32 VMEM
    w2_ref : (H,H)  bf16 VMEM -- (in,out) layout
    b2_ref : (1,H)  f32 VMEM
    o_ref  : (bm,H) f32 VMEM
    """
    a = a_ref[0, 0]
    x = x_ref[...]
    h = jnp.where(x > 0, x, a * x)                       # PReLU, f32 VPU (v5e-safe)
    h = jnp.dot(h.astype(jnp.bfloat16), w1_ref[...],
                preferred_element_type=jnp.float32) + b1_ref[...]
    h = jnp.where(h > 0, h, a * h)
    h = jnp.dot(h.astype(jnp.bfloat16), w2_ref[...],
                preferred_element_type=jnp.float32) + b2_ref[...]
    o_ref[...] = (h + x).astype(o_ref.dtype)             # residual


def _chunked_kernel(a_ref, x_ref, w1_ref, b1_ref, w2_ref, b2_ref, o_ref, acc_ref):
    """Large-H path: stream W1 column-chunks / W2 row-chunks over grid axis j.

    Grid = (batch tiles, H // Hc).  Per (i, j):
        h1 = prelu( prelu(x_i) @ W1[:, j] + b1[j] )
        acc_i += h1 @ W2[j, :]
    j==0 zeros acc; j==last adds b2 + residual and writes the output tile.
    """
    j = pl.program_id(1)
    a = a_ref[0, 0]
    x = x_ref[...]                                       # (bm, H) f32

    @pl.when(j == 0)
    def _():
        acc_ref[...] = jnp.zeros_like(acc_ref)

    h = jnp.where(x > 0, x, a * x)
    h1 = jnp.dot(h.astype(jnp.bfloat16), w1_ref[...],    # (bm, Hc)
                 preferred_element_type=jnp.float32) + b1_ref[...]
    h1 = jnp.where(h1 > 0, h1, a * h1)
    acc_ref[...] += jnp.dot(h1.astype(jnp.bfloat16), w2_ref[...],
                            preferred_element_type=jnp.float32)

    @pl.when(j == pl.num_programs(1) - 1)
    def _():
        o_ref[...] = (acc_ref[...] + b2_ref[...] + x).astype(o_ref.dtype)


# ---------------------------------------------------------------------------
# Host-side helpers
# ---------------------------------------------------------------------------

_VMEM_HEADROOM = 8 << 20          # leave room for compiler-internal scratch


def _usable_vmem_bytes():
    """Physical per-core VMEM minus headroom, with conservative fallbacks."""
    try:
        return max(int(pltpu.get_tpu_info().vmem_capacity_bytes) - _VMEM_HEADROOM,
                   16 << 20)
    except Exception:          # host-side capability query only; not a compile path
        pass
    try:
        kind = jax.devices()[0].device_kind.lower()
    except Exception:
        kind = ""
    phys = (64 << 20) if "v7" in kind else (128 << 20)
    return phys - _VMEM_HEADROOM


def _num_tensorcores():
    """2 on megacore-style chips (v4/v5p/v7x), else 1 (v5e/v6e)."""
    try:
        kind = jax.devices()[0].device_kind.lower()
    except Exception:
        kind = ""
    return 2 if any(t in kind for t in ("v7", "v4", "v5p")) else 1


def _round_up(v, m):
    return -(-v // m) * m


def prepare_params(w1, b1, w2, b2):
    """One-time conversion of PyTorch nn.Linear params to kernel layout:
    (out,in) -> (in,out), weights cast to bf16 for the MXU (never per call)."""
    w1_io = jnp.asarray(w1, jnp.float32).T.astype(jnp.bfloat16)
    w2_io = jnp.asarray(w2, jnp.float32).T.astype(jnp.bfloat16)
    return (w1_io, jnp.asarray(b1, jnp.float32),
            w2_io, jnp.asarray(b2, jnp.float32))


# ---------------------------------------------------------------------------
# Wrapper
# ---------------------------------------------------------------------------

def two_layer_preact_resnet_linear(x, w1_io, b1, w2_io, b2, prelu_a, *,
                                   bm=None, chunk=None, force_chunked=False):
    """x: (B,H) f32; w1_io/w2_io: (H,H) bf16 in (in,out) layout (prepare_params);
    b1/b2: (H,) f32; prelu_a: scalar PReLU slope."""
    B, H = x.shape
    usable = _usable_vmem_bytes()
    ntc = _num_tensorcores()

    # ---- resident vs chunked weight strategy -------------------------------
    resident_w_bytes = 2 * 2 * H * H * 2        # 2 weights, double-buffered, bf16
    min_act_bytes = 2 * 2 * 8 * H * 4 * 2 + 2 * 2 * 8 * H * 4   # bm=8 x/out + biases
    chunk_possible = (H % 128 == 0)
    use_chunked = bool(force_chunked) or (
        chunk_possible and (resident_w_bytes + min_act_bytes > 0.8 * usable))

    if use_chunked:
        if chunk is None:
            cap = max(128, (int(0.4 * usable) // (8 * H)) // 128 * 128)
            hc = 128
            for cand in range(128, min(512, cap) + 1, 128):
                if H % cand == 0:
                    hc = cand
        else:
            hc = int(chunk)
        assert H % hc == 0 and hc % 128 == 0, "chunk must divide H and be a multiple of 128"
        weight_block_bytes = 2 * 2 * H * hc * 2   # W1 col-chunk + W2 row-chunk, dbl-buffered
    else:
        hc = H
        weight_block_bytes = resident_w_bytes

    # ---- VMEM-aware batch tile ----------------------------------------------
    if bm is None:
        per_row = 20 * H                          # x + out (double-buffered) + f32 acc
        act_budget = max(usable - weight_block_bytes, per_row * 8)
        cap = min(512, (act_budget // 2) // per_row, _round_up(B, 8))
        if ntc >= 2 and B >= 16:
            # Only force >=2 grid steps where there is a second TensorCore to feed.
            cap = min(cap, _round_up(-(-B // ntc), 8))
        bm = max(8, (int(cap) // 8) * 8)
    bm = int(bm)
    assert bm % 8 == 0, "bm must be a multiple of 8"

    # ---- pad batch to a multiple of bm (sliced off at the end) --------------
    B_pad = _round_up(B, bm)
    x_in = x if B_pad == B else jnp.pad(x, ((0, B_pad - B), (0, 0)))
    n_i = B_pad // bm

    a_2d = jnp.asarray(prelu_a, jnp.float32).reshape(1, 1)
    b1_2d = jnp.asarray(b1, jnp.float32).reshape(1, H)
    b2_2d = jnp.asarray(b2, jnp.float32).reshape(1, H)

    vmem_limit = int(min(usable, 128 << 20))

    # Weights are fetched once for the resident path (constant block index),
    # and re-streamed once per batch tile for the chunked path.
    w_bytes_streamed = (n_i if use_chunked else 1) * 2 * H * H * 2
    cost = pl.CostEstimate(
        flops=int(4 * B_pad * H * H),
        transcendentals=0,
        bytes_accessed=int(2 * B_pad * H * 4 + w_bytes_streamed + 2 * H * 4 + 4),
    )

    if not use_chunked:
        call = pl.pallas_call(
            _resident_kernel,
            out_shape=jax.ShapeDtypeStruct((B_pad, H), x.dtype),
            grid_spec=pltpu.PrefetchScalarGridSpec(
                num_scalar_prefetch=0,
                grid=(n_i,),
                in_specs=[
                    pl.BlockSpec(memory_space=pltpu.MemorySpace.SMEM),   # PReLU slope
                    pl.BlockSpec((bm, H), lambda i: (i, 0)),             # x tile
                    pl.BlockSpec((H, H), lambda i: (0, 0)),              # W1 (in,out) bf16
                    pl.BlockSpec((1, H), lambda i: (0, 0)),              # b1
                    pl.BlockSpec((H, H), lambda i: (0, 0)),              # W2 (in,out) bf16
                    pl.BlockSpec((1, H), lambda i: (0, 0)),              # b2
                ],
                out_specs=pl.BlockSpec((bm, H), lambda i: (i, 0)),
            ),
            compiler_params=pltpu.CompilerParams(
                dimension_semantics=("parallel",),
                vmem_limit_bytes=vmem_limit,
            ),
            cost_estimate=cost,
        )
    else:
        call = pl.pallas_call(
            _chunked_kernel,
            out_shape=jax.ShapeDtypeStruct((B_pad, H), x.dtype),
            grid_spec=pltpu.PrefetchScalarGridSpec(
                num_scalar_prefetch=0,
                grid=(n_i, H // hc),
                in_specs=[
                    pl.BlockSpec(memory_space=pltpu.MemorySpace.SMEM),   # PReLU slope
                    pl.BlockSpec((bm, H), lambda i, j: (i, 0)),          # x tile (const over j)
                    pl.BlockSpec((H, hc), lambda i, j: (0, j)),          # W1 column chunk
                    pl.BlockSpec((1, hc), lambda i, j: (0, j)),          # b1 chunk
                    pl.BlockSpec((hc, H), lambda i, j: (j, 0)),          # W2 row chunk
                    pl.BlockSpec((1, H), lambda i, j: (0, 0)),           # b2
                ],
                out_specs=pl.BlockSpec((bm, H), lambda i, j: (i, 0)),
                scratch_shapes=[pltpu.VMEM((bm, H), jnp.float32)],       # f32 accumulator
            ),
            compiler_params=pltpu.CompilerParams(
                dimension_semantics=("parallel", "arbitrary"),
                vmem_limit_bytes=vmem_limit,
            ),
            cost_estimate=cost,
        )

    out = call(a_2d, x_in, w1_io, b1_2d, w2_io, b2_2d)
    return out if B_pad == B else out[:B]


# ---------------------------------------------------------------------------
# Self-test
# ---------------------------------------------------------------------------

if __name__ == "__main__":
    def reference(x, w1, b1, w2, b2, a):
        prelu = lambda v: jnp.where(v > 0, v, a * v)
        h = prelu(x) @ w1.T + b1
        h = prelu(h) @ w2.T + b2
        return h + x

    def make_case(key, B, H):
        kx, k1, kb1, k2, kb2 = jax.random.split(key, 5)
        bound = 1.0 / jnp.sqrt(H)
        x = jax.random.normal(kx, (B, H), jnp.float32)
        w1 = jax.random.uniform(k1, (H, H), jnp.float32, -bound, bound)
        b1 = jax.random.uniform(kb1, (H,), jnp.float32, -bound, bound)
        w2 = jax.random.uniform(k2, (H, H), jnp.float32, -bound, bound)
        b2 = jax.random.uniform(kb2, (H,), jnp.float32, -bound, bound)
        return x, w1, b1, w2, b2

    prelu_a = 0.25  # nn.PReLU() default init

    # Case 1: resident-weights path; B=60 also exercises batch padding to the tile.
    x, w1, b1, w2, b2 = make_case(jax.random.PRNGKey(0), 60, 128)
    p = prepare_params(w1, b1, w2, b2)
    out = jax.block_until_ready(two_layer_preact_resnet_linear(x, *p, prelu_a))
    ref = reference(x, w1, b1, w2, b2, prelu_a)
    assert out.shape == x.shape
    assert jnp.allclose(out, ref, atol=3e-2, rtol=3e-2), (
        f"resident path mismatch; max abs err = {jnp.max(jnp.abs(out - ref))}")

    # Case 2: force the chunked (large-H streaming) path at a small shape so both
    # kernels are validated; chunk=128 gives 2 accumulation steps over H=256.
    x, w1, b1, w2, b2 = make_case(jax.random.PRNGKey(1), 32, 256)
    p = prepare_params(w1, b1, w2, b2)
    out = jax.block_until_ready(
        two_layer_preact_resnet_linear(x, *p, prelu_a, force_chunked=True, chunk=128))
    ref = reference(x, w1, b1, w2, b2, prelu_a)
    assert out.shape == x.shape
    assert jnp.allclose(out, ref, atol=3e-2, rtol=3e-2), (
        f"chunked path mismatch; max abs err = {jnp.max(jnp.abs(out - ref))}")

    print("KERNEL_OK")
</pallas_src>

<mosaic_0001>
module attributes {stable_mosaic.version = 11 : i64} {
  func.func @_resident_kernel(%arg0: i32, %arg1: memref<1x1xf32, #tpu.memory_space<smem>>, %arg2: memref<64x128xf32, #tpu.memory_space<vmem>>, %arg3: memref<128x128xbf16, #tpu.memory_space<vmem>>, %arg4: memref<1x128xf32, #tpu.memory_space<vmem>>, %arg5: memref<128x128xbf16, #tpu.memory_space<vmem>>, %arg6: memref<1x128xf32, #tpu.memory_space<vmem>>, %arg7: memref<64x128xf32, #tpu.memory_space<vmem>>) attributes {dimension_semantics = [#tpu.dimension_semantics<parallel>], iteration_bounds = array<i64: 1>, scalar_prefetch = 0 : i64, scratch_operands = 0 : i64, tpu.core_type = #tpu.core_type<tc>, window_params = [{transform_indices = @transform_0, window_bounds = array<i64: 1, 1>}, {transform_indices = @transform_1, window_bounds = array<i64: 64, 128>}, {pipeline_mode = #tpu.pipeline_mode<synchronous>, transform_indices = @transform_2, window_bounds = array<i64: 128, 128>}, {pipeline_mode = #tpu.pipeline_mode<synchronous>, transform_indices = @transform_3, window_bounds = array<i64: 1, 128>}, {pipeline_mode = #tpu.pipeline_mode<synchronous>, transform_indices = @transform_4, window_bounds = array<i64: 128, 128>}, {pipeline_mode = #tpu.pipeline_mode<synchronous>, transform_indices = @transform_5, window_bounds = array<i64: 1, 128>}, {transform_indices = @transform_6, window_bounds = array<i64: 64, 128>}]} {
    %c0 = arith.constant 0 : index
    %c0_0 = arith.constant 0 : index
    %0 = memref.load %arg1[%c0, %c0_0] : memref<1x1xf32, #tpu.memory_space<smem>>
    %c0_1 = arith.constant 0 : index
    %c0_2 = arith.constant 0 : index
    %1 = vector.load %arg2[%c0_1, %c0_2] : memref<64x128xf32, #tpu.memory_space<vmem>>, vector<64x128xf32>
    %cst = arith.constant 0.000000e+00 : f32
    %2 = vector.broadcast %cst : f32 to vector<64x128xf32>
    %3 = arith.cmpf ogt, %1, %2 : vector<64x128xf32>
    %4 = vector.broadcast %0 : f32 to vector<64x128xf32>
    %5 = arith.mulf %4, %1 : vector<64x128xf32>
    %6 = arith.select %3, %1, %5 : vector<64x128xi1>, vector<64x128xf32>
    %7 = arith.truncf %6 : vector<64x128xf32> to vector<64x128xbf16>
    %c0_3 = arith.constant 0 : index
    %c0_4 = arith.constant 0 : index
    %8 = vector.load %arg3[%c0_3, %c0_4] : memref<128x128xbf16, #tpu.memory_space<vmem>>, vector<128x128xbf16>
    %cst_5 = arith.constant dense<0.000000e+00> : vector<64x128xf32>
    %9 = tpu.matmul %7, %8, %cst_5 {dimension_numbers = #tpu.dot_dimension_numbers<[1], [0], [0], [1], [0, 0, 1, 1], [], []>} : vector<64x128xbf16>, vector<128x128xbf16>, vector<64x128xf32> -> vector<64x128xf32>
    %c0_6 = arith.constant 0 : index
    %c0_7 = arith.constant 0 : index
    %10 = vector.load %arg4[%c0_6, %c0_7] : memref<1x128xf32, #tpu.memory_space<vmem>>, vector<1x128xf32>
    %11 = vector.broadcast %10 : vector<1x128xf32> to vector<64x128xf32>
    %12 = arith.addf %9, %11 : vector<64x128xf32>
    %cst_8 = arith.constant 0.000000e+00 : f32
    %13 = vector.broadcast %cst_8 : f32 to vector<64x128xf32>
    %14 = arith.cmpf ogt, %12, %13 : vector<64x128xf32>
    %15 = vector.broadcast %0 : f32 to vector<64x128xf32>
    %16 = arith.mulf %15, %12 : vector<64x128xf32>
    %17 = arith.select %14, %12, %16 : vector<64x128xi1>, vector<64x128xf32>
    %18 = arith.truncf %17 : vector<64x128xf32> to vector<64x128xbf16>
    %c0_9 = arith.constant 0 : index
    %c0_10 = arith.constant 0 : index
    %19 = vector.load %arg5[%c0_9, %c0_10] : memref<128x128xbf16, #tpu.memory_space<vmem>>, vector<128x128xbf16>
    %cst_11 = arith.constant dense<0.000000e+00> : vector<64x128xf32>
    %20 = tpu.matmul %18, %19, %cst_11 {dimension_numbers = #tpu.dot_dimension_numbers<[1], [0], [0], [1], [0, 0, 1, 1], [], []>} : vector<64x128xbf16>, vector<128x128xbf16>, vector<64x128xf32> -> vector<64x128xf32>
    %c0_12 = arith.constant 0 : index
    %c0_13 = arith.constant 0 : index
    %21 = vector.load %arg6[%c0_12, %c0_13] : memref<1x128xf32, #tpu.memory_space<vmem>>, vector<1x128xf32>
    %22 = vector.broadcast %21 : vector<1x128xf32> to vector<64x128xf32>
    %23 = arith.addf %20, %22 : vector<64x128xf32>
    %24 = arith.addf %23, %1 : vector<64x128xf32>
    %c0_14 = arith.constant 0 : index
    %c0_15 = arith.constant 0 : index
    %25 = vector.load %arg7[%c0_14, %c0_15] : memref<64x128xf32, #tpu.memory_space<vmem>>, vector<64x128xf32>
    tpu.vector_store %arg7[%c0_14, %c0_15], %24 {strides = array<i32>} : memref<64x128xf32, #tpu.memory_space<vmem>>, vector<64x128xf32>,
    return
  }
  func.func @transform_0(%arg0: i32) -> (i32, i32) {
    %c0_i32 = arith.constant 0 : i32
    %c0_i32_0 = arith.constant 0 : i32
    %c0_i32_1 = arith.constant 0 : i32
    return %c0_i32, %c0_i32_0 : i32, i32
  }
  func.func @transform_1(%arg0: i32) -> (i32, i32) {
    %c0_i32 = arith.constant 0 : i32
    %c0_i32_0 = arith.constant 0 : i32
    return %arg0, %c0_i32 : i32, i32
  }
  func.func @transform_2(%arg0: i32) -> (i32, i32) {
    %c0_i32 = arith.constant 0 : i32
    %c0_i32_0 = arith.constant 0 : i32
    %c0_i32_1 = arith.constant 0 : i32
    return %c0_i32, %c0_i32_0 : i32, i32
  }
  func.func @transform_3(%arg0: i32) -> (i32, i32) {
    %c0_i32 = arith.constant 0 : i32
    %c0_i32_0 = arith.constant 0 : i32
    %c0_i32_1 = arith.constant 0 : i32
    return %c0_i32, %c0_i32_0 : i32, i32
  }
  func.func @transform_4(%arg0: i32) -> (i32, i32) {
    %c0_i32 = arith.constant 0 : i32
    %c0_i32_0 = arith.constant 0 : i32
    %c0_i32_1 = arith.constant 0 : i32
    return %c0_i32, %c0_i32_0 : i32, i32
  }
  func.func @transform_5(%arg0: i32) -> (i32, i32) {
    %c0_i32 = arith.constant 0 : i32
    %c0_i32_0 = arith.constant 0 : i32
    %c0_i32_1 = arith.constant 0 : i32
    return %c0_i32, %c0_i32_0 : i32, i32
  }
  func.func @transform_6(%arg0: i32) -> (i32, i32) {
    %c0_i32 = arith.constant 0 : i32
    %c0_i32_0 = arith.constant 0 : i32
    return %arg0, %c0_i32 : i32, i32
  }
}

</mosaic_0001>

<llo_original>
// kernel: tpu_custom_call.1
$region0: #{tpu_custom_call.1}
  #allocation0 [shape = 'u32[]', space=smem, size = 0x4, offset = 0x4, fixed_abs, tag = 'smem constant byte address 0x4 - core index']
  #allocation1 [shape = 'u32[144,128]{1,0:T(1,128)}', space=vmem, size = 0x12000, scoped, tag = 'internal scratch']
  #allocation2 [shape = 'f32[1,1]{1,0:T(1,128)S(6)}', space=smem, size = 0x200, scoped, tag = 'scoped memory for tpu_custom_call.1']
  %s0 = inlined_call_operand.<no memory space> [shape: f32[1,1], index: 0, kind: input, shape index: {}]
  %s1 = inlined_call_operand.hbm [shape: f32[64,128], index: 1, kind: input, shape index: {}]
  %s2 = inlined_call_operand.hbm [shape: bf16[128,128], index: 2, kind: input, shape index: {}]
  %s3 = inlined_call_operand.vmem [shape: f32[1,128], index: 3, kind: input, shape index: {}]
  %s4 = inlined_call_operand.hbm [shape: bf16[128,128], index: 4, kind: input, shape index: {}]
  %s5 = inlined_call_operand.vmem [shape: f32[1,128], index: 5, kind: input, shape index: {}]
  %s6 = inlined_call_operand.hbm [shape: f32[64,128], index: 6, kind: output, shape index: {}]
  %s7 = sld [smem:[#allocation0]]
  $region46: #{tpu_custom_call.1} parent=0
    _
  %s9 = ssub.s32 1, %s7
  %s10 = scalar_select 0, %s9, %s7
  %11 = sst [smem:[#allocation2]] %s0
  $region1: #{tpu_custom_call.1} parent=0
    #allocation3 [shape = 'u8[32768]{0}', space=vmem, size = 0x8000, scoped, tag = 'input window, operand 1, single buffered']
    #allocation4 [shape = 's32[1]{0}', space=sflag, size = 0x4, scoped, tag = 'scoped memory for tpu_custom_call.1']
    #allocation5 [shape = 's32[1]{0}', space=sflag, size = 0x4, scoped, tag = 'scoped memory for tpu_custom_call.1']
    #allocation6 [shape = 'u8[32768]{0}', space=vmem, size = 0x8000, scoped, tag = 'input window, operand 2, single buffered']
    #allocation7 [shape = 's32[1]{0}', space=sflag, size = 0x4, scoped, tag = 'scoped memory for tpu_custom_call.1']
    #allocation8 [shape = 'u8[32768]{0}', space=vmem, size = 0x8000, scoped, tag = 'input window, operand 4, single buffered']
    #allocation9 [shape = 'u8[32768]{0}', space=vmem, size = 0x8000, scoped, tag = 'output window, operand 0, single buffered']
    %12 = vsyncpa [#allocation4], 0
    %13 = vsyncpa [#allocation7], 0
    %14 = vsyncpa [#allocation5], 0
    // Predicated region
    $region2: #{tpu_custom_call.1} parent=1 // pred_check
      _
    $region3: #{tpu_custom_call.1} parent=1 // pred_check_branch
      %16 = sbr.rel (0) target = $region5
    $region4: #{tpu_custom_call.1} parent=1 // pred_region
      _
    $region5: #{tpu_custom_call.1} parent=1 // pred_fallthru
      _
    // Predicated region
    $region6: #{tpu_custom_call.1} parent=1 // pred_check
      _
    $region7: #{tpu_custom_call.1} parent=1 // pred_check_branch
      %18 = sbr.rel (0) target = $region9
    $region8: #{tpu_custom_call.1} parent=1 // pred_region
      %s20 = ssub.s32 1024, 1024
      %21 = vsyncadd [#allocation4], %s20
      %s22 = sshll.u32 [#allocation3], 4
      %s23 = int_to_ptr.vmem [resolvable:$true] %s22
      %28 = dma.hbm_to_vmem [thread:$0]  %s1, 1024, %s23, [#allocation4], 128, 128, 8
    $region9: #{tpu_custom_call.1} parent=1 // pred_fallthru
      _
    // Predicated region
    $region10: #{tpu_custom_call.1} parent=1 // pred_check
      _
    $region11: #{tpu_custom_call.1} parent=1 // pred_check_branch
      %30 = sbr.rel (0) target = $region13
    $region12: #{tpu_custom_call.1} parent=1 // pred_region
      %s32 = ssub.s32 1024, 1024
      %33 = vsyncadd [#allocation7], %s32
      %s34 = sshll.u32 [#allocation6], 4
      %s35 = int_to_ptr.vmem [resolvable:$true] %s34
      %40 = dma.hbm_to_vmem [thread:$0]  %s2, 1024, %s35, [#allocation7], 64, 64, 4
    $region13: #{tpu_custom_call.1} parent=1 // pred_fallthru
      _
    // Predicated region
    $region14: #{tpu_custom_call.1} parent=1 // pred_check
      _
    $region15: #{tpu_custom_call.1} parent=1 // pred_check_branch
      %42 = sbr.rel (0) target = $region17
    $region16: #{tpu_custom_call.1} parent=1 // pred_region
      _
    $region17: #{tpu_custom_call.1} parent=1 // pred_fallthru
      _
    // Predicated region
    $region18: #{tpu_custom_call.1} parent=1 // pred_check
      _
    $region19: #{tpu_custom_call.1} parent=1 // pred_check_branch
      %44 = sbr.rel (0) target = $region21
    $region20: #{tpu_custom_call.1} parent=1 // pred_region
      %s46 = ssub.s32 1024, 1024
      %47 = vsyncadd [#allocation7], %s46
      %s48 = sshll.u32 [#allocation8], 4
      %s49 = int_to_ptr.vmem [resolvable:$true] %s48
      %54 = dma.hbm_to_vmem [thread:$0]  %s4, 1024, %s49, [#allocation7], 64, 64, 4
    $region21: #{tpu_custom_call.1} parent=1 // pred_fallthru
      _
    // Predicated region
    $region22: #{tpu_custom_call.1} parent=1 // pred_check
      _
    $region23: #{tpu_custom_call.1} parent=1 // pred_check_branch
      %56 = sbr.rel (0) target = $region25
    $region24: #{tpu_custom_call.1} parent=1 // pred_region
      _
    $region25: #{tpu_custom_call.1} parent=1 // pred_fallthru
      _
    // Predicated region
    $region26: #{tpu_custom_call.1} parent=1 // pred_check
      _
    $region27: #{tpu_custom_call.1} parent=1 // pred_check_branch
      %58 = sbr.rel (0) target = $region29
    $region28: #{tpu_custom_call.1} parent=1 // pred_region
      %59 = dma.done [#allocation4], 1024
    $region29: #{tpu_custom_call.1} parent=1 // pred_fallthru
      _
    // Predicated region
    $region30: #{tpu_custom_call.1} parent=1 // pred_check
      _
    $region31: #{tpu_custom_call.1} parent=1 // pred_check_branch
      %61 = sbr.rel (0) target = $region33
    $region32: #{tpu_custom_call.1} parent=1 // pred_region
      %62 = dma.done [#allocation7], 1024
    $region33: #{tpu_custom_call.1} parent=1 // pred_fallthru
      _
    // Predicated region
    $region34: #{tpu_custom_call.1} parent=1 // pred_check
      _
    $region35: #{tpu_custom_call.1} parent=1 // pred_check_branch
      %64 = sbr.rel (0) target = $region37
    $region36: #{tpu_custom_call.1} parent=1 // pred_region
      %65 = dma.done [#allocation7], 1024
    $region37: #{tpu_custom_call.1} parent=1 // pred_fallthru
      _
    %s67 = sld [smem:[#allocation2]]
    %v68 = vld [vmem:[#allocation3] sm:$0xff]
    %v69 = vld [vmem:[#allocation3 + $0x8] sm:$0xff]
    %v70 = vld [vmem:[#allocation3 + $0x10] sm:$0xff]
    %v71 = vld [vmem:[#allocation3 + $0x18] sm:$0xff]
    %v72 = vld [vmem:[#allocation3 + $0x20] sm:$0xff]
    %v73 = vld [vmem:[#allocation3 + $0x28] sm:$0xff]
    %v74 = vld [vmem:[#allocation3 + $0x30] sm:$0xff]
    %v75 = vld [vmem:[#allocation3 + $0x38] sm:$0xff]
    %vm76 = vcmp.gt.f32.partialorder %v68, 0.0
    %vm77 = vcmp.gt.f32.partialorder %v69, 0.0
    %vm78 = vcmp.gt.f32.partialorder %v70, 0.0
    %vm79 = vcmp.gt.f32.partialorder %v71, 0.0
    %vm80 = vcmp.gt.f32.partialorder %v72, 0.0
    %vm81 = vcmp.gt.f32.partialorder %v73, 0.0
    %vm82 = vcmp.gt.f32.partialorder %v74, 0.0
    %vm83 = vcmp.gt.f32.partialorder %v75, 0.0
    %v84 = vstv %s67
    %v85 = vmul.f32 %v84, %v68
    %v86 = vmul.f32 %v84, %v69
    %v87 = vmul.f32 %v84, %v70
    %v88 = vmul.f32 %v84, %v71
    %v89 = vmul.f32 %v84, %v72
    %v90 = vmul.f32 %v84, %v73
    %v91 = vmul.f32 %v84, %v74
    %v92 = vmul.f32 %v84, %v75
    %v93 = vsel %vm76, %v68, %v85
    %v94 = vsel %vm77, %v69, %v86
    %v95 = vsel %vm78, %v70, %v87
    %v96 = vsel %vm79, %v71, %v88
    %v97 = vsel %vm80, %v72, %v89
    %v98 = vsel %vm81, %v73, %v90
    %v99 = vsel %vm82, %v74, %v91
    %v100 = vsel %vm83, %v75, %v92
    %v101 = vpack.c.bf16 %v94, %v93
    %v102 = vpack.c.bf16 %v96, %v95
    %v103 = vpack.c.bf16 %v98, %v97
    %v104 = vpack.c.bf16 %v100, %v99
    %v105 = vld [vmem:[#allocation6] sm:$0xf]
    %v106 = vld [vmem:[#allocation6 + $0x4] sm:$0xf]
    %v107 = vld [vmem:[#allocation6 + $0x8] sm:$0xf]
    %v108 = vld [vmem:[#allocation6 + $0xc] sm:$0xf]
    %v109 = vld [vmem:[#allocation6 + $0x10] sm:$0xf]
    %v110 = vld [vmem:[#allocation6 + $0x14] sm:$0xf]
    %v111 = vld [vmem:[#allocation6 + $0x18] sm:$0xf]
    %v112 = vld [vmem:[#allocation6 + $0x1c] sm:$0xf]
    %v113 = vld [vmem:[#allocation6 + $0x20] sm:$0xf]
    %v114 = vld [vmem:[#allocation6 + $0x24] sm:$0xf]
    %v115 = vld [vmem:[#allocation6 + $0x28] sm:$0xf]
    %v116 = vld [vmem:[#allocation6 + $0x2c] sm:$0xf]
    %v117 = vld [vmem:[#allocation6 + $0x30] sm:$0xf]
    %v118 = vld [vmem:[#allocation6 + $0x34] sm:$0xf]
    %v119 = vld [vmem:[#allocation6 + $0x38] sm:$0xf]
    %v120 = vld [vmem:[#allocation6 + $0x3c] sm:$0xf]
    %v121 = vld [vmem:[%s3] sm:$0x1]
    %v123 = vlaneseq
    %v124 = vshrl.u32 %v123, 7
    %v125 = vsub.s32 0, %v124
    %v126 = vrot.slane %v121, %v125
    %v144 = vunpack.c.l.b16 %v105
    %v145 = vunpack.c.l.b16 %v106
    %v146 = vunpack.c.l.b16 %v107
    %v147 = vunpack.c.l.b16 %v108
    %v148 = vunpack.c.l.b16 %v109
    %v149 = vunpack.c.l.b16 %v110
    %v150 = vunpack.c.l.b16 %v111
    %v151 = vunpack.c.l.b16 %v112
    %v152 = vunpack.c.l.b16 %v113
    %v153 = vunpack.c.l.b16 %v114
    %v154 = vunpack.c.l.b16 %v115
    %v155 = vunpack.c.l.b16 %v116
    %v156 = vunpack.c.l.b16 %v117
    %v157 = vunpack.c.l.b16 %v118
    %v158 = vunpack.c.l.b16 %v119
    %v159 = vunpack.c.l.b16 %v120
    %v160 = vpack.c.b16 %v145, %v144
    %v161 = vpack.c.b16 %v147, %v146
    %v162 = vpack.c.b16 %v149, %v148
    %v163 = vpack.c.b16 %v151, %v150
    %v164 = vpack.c.b16 %v153, %v152
    %v165 = vpack.c.b16 %v155, %v154
    %v166 = vpack.c.b16 %v157, %v156
    %v167 = vpack.c.b16 %v159, %v158
    %176 = vmatprep.subr.bf16.mxu0 0
    %177 = vmatpush1.bf16.msra.mxu0 %v167
    %178 = vmatprep.subr.bf16.mxu0 0
    %179 = vmatpush1.bf16.msra.mxu0 %v166
    %180 = vmatprep.subr.bf16.mxu0 0
    %181 = vmatpush1.bf16.msra.mxu0 %v165
    %182 = vmatprep.subr.bf16.mxu0 0
    %183 = vmatpush1.bf16.msra.mxu0 %v164
    %184 = vmatprep.subr.bf16.mxu0 0
    %185 = vmatpush1.bf16.msra.mxu0 %v163
    %186 = vmatprep.subr.bf16.mxu0 0
    %187 = vmatpush1.bf16.msra.mxu0 %v162
    %188 = vmatprep.subr.bf16.mxu0 0
    %189 = vmatpush1.bf16.msra.mxu0 %v161
    %190 = vmatprep.subr.bf16.mxu0 0
    %191 = vmatpush1.bf16.msra.mxu0 %v160
    %192 = vmatprep.subr.bf16.mxu0 0
    %193 = vmatpush2.bf16.msra.mxu0 0
    %194 = vmatprep.subr.bf16.mxu0 0
    %195 = vmatpush2.bf16.msra.mxu0 0
    %196 = vmatprep.subr.bf16.mxu0 0
    %197 = vmatpush2.bf16.msra.mxu0 0
    %198 = vmatprep.subr.bf16.mxu0 0
    %199 = vmatpush2.bf16.msra.mxu0 0
    %200 = vmatprep.subr.bf16.mxu0 0
    %201 = vmatpush2.bf16.msra.mxu0 0
    %202 = vmatprep.subr.bf16.mxu0 0
    %203 = vmatpush2.bf16.msra.mxu0 0
    %204 = vmatprep.subr.bf16.mxu0 0
    %205 = vmatpush2.bf16.msra.mxu0 0
    %206 = vmatprep.subr.bf16.mxu0 0
    %207 = vmatpush2.bf16.msra.mxu0 0
    %208 = vmatprep.mubr.bf16.mxu0 0
    %209 = vmatmul.mubr.bf16.gmra.mxu0 %v101
    %v210 = vpop.f32.mrf.mxu0
    %v211 = vadd.f32 %v126, %v210
    %v212 = vpop.f32.mrf.mxu0
    %v213 = vpop.f32.mrf.mxu0
    %v214 = vadd.f32 %v126, %v213
    %v215 = vpop.f32.mrf.mxu0
    %216 = vmatprep.mubr.bf16.mxu0 0
    %217 = vmatmul.mubr.bf16.gmra.mxu0 %v102
    %v218 = vpop.f32.mrf.mxu0
    %v219 = vadd.f32 %v126, %v218
    %v220 = vpop.f32.mrf.mxu0
    %v221 = vpop.f32.mrf.mxu0
    %v222 = vadd.f32 %v126, %v221
    %v223 = vpop.f32.mrf.mxu0
    %224 = vmatprep.mubr.bf16.mxu0 0
    %225 = vmatmul.mubr.bf16.gmra.mxu0 %v103
    %v226 = vpop.f32.mrf.mxu0
    %v227 = vadd.f32 %v126, %v226
    %v228 = vpop.f32.mrf.mxu0
    %v229 = vpop.f32.mrf.mxu0
    %v230 = vadd.f32 %v126, %v229
    %v231 = vpop.f32.mrf.mxu0
    %232 = vmatprep.mubr.bf16.mxu0 0
    %233 = vmatmul.mubr.bf16.gmra.mxu0 %v104
    %v234 = vpop.f32.mrf.mxu0
    %v235 = vadd.f32 %v126, %v234
    %v236 = vpop.f32.mrf.mxu0
    %v237 = vpop.f32.mrf.mxu0
    %v238 = vadd.f32 %v126, %v237
    %v239 = vpop.f32.mrf.mxu0
    %240 = vdwg.mxu0
    %vm241 = vcmp.gt.f32.partialorder %v211, 0.0
    %vm242 = vcmp.gt.f32.partialorder %v214, 0.0
    %vm243 = vcmp.gt.f32.partialorder %v219, 0.0
    %vm244 = vcmp.gt.f32.partialorder %v222, 0.0
    %vm245 = vcmp.gt.f32.partialorder %v227, 0.0
    %vm246 = vcmp.gt.f32.partialorder %v230, 0.0
    %vm247 = vcmp.gt.f32.partialorder %v235, 0.0
    %vm248 = vcmp.gt.f32.partialorder %v238, 0.0
    %v249 = vmul.f32 %v84, %v211
    %v250 = vmul.f32 %v84, %v214
    %v251 = vmul.f32 %v84, %v219
    %v252 = vmul.f32 %v84, %v222
    %v253 = vmul.f32 %v84, %v227
    %v254 = vmul.f32 %v84, %v230
    %v255 = vmul.f32 %v84, %v235
    %v256 = vmul.f32 %v84, %v238
    %v257 = vsel %vm241, %v211, %v249
    %v258 = vsel %vm242, %v214, %v250
    %v259 = vsel %vm243, %v219, %v251
    %v260 = vsel %vm244, %v222, %v252
    %v261 = vsel %vm245, %v227, %v253
    %v262 = vsel %vm246, %v230, %v254
    %v263 = vsel %vm247, %v235, %v255
    %v264 = vsel %vm248, %v238, %v256
    %v265 = vpack.c.bf16 %v258, %v257
    %v266 = vpack.c.bf16 %v260, %v259
    %v267 = vpack.c.bf16 %v262, %v261
    %v268 = vpack.c.bf16 %v264, %v263
    %v269 = vld [vmem:[#allocation8] sm:$0xf]
    %v270 = vld [vmem:[#allocation8 + $0x4] sm:$0xf]
    %v271 = vld [vmem:[#allocation8 + $0x8] sm:$0xf]
    %v272 = vld [vmem:[#allocation8 + $0xc] sm:$0xf]
    %v273 = vld [vmem:[#allocation8 + $0x10] sm:$0xf]
    %v274 = vld [vmem:[#allocation8 + $0x14] sm:$0xf]
    %v275 = vld [vmem:[#allocation8 + $0x18] sm:$0xf]
    %v276 = vld [vmem:[#allocation8 + $0x1c] sm:$0xf]
    %v277 = vld [vmem:[#allocation8 + $0x20] sm:$0xf]
    %v278 = vld [vmem:[#allocation8 + $0x24] sm:$0xf]
    %v279 = vld [vmem:[#allocation8 + $0x28] sm:$0xf]
    %v280 = vld [vmem:[#allocation8 + $0x2c] sm:$0xf]
    %v281 = vld [vmem:[#allocation8 + $0x30] sm:$0xf]
    %v282 = vld [vmem:[#allocation8 + $0x34] sm:$0xf]
    %v283 = vld [vmem:[#allocation8 + $0x38] sm:$0xf]
    %v284 = vld [vmem:[#allocation8 + $0x3c] sm:$0xf]
    %v285 = vld [vmem:[%s5] sm:$0x1]
    %v287 = vlaneseq
    %v288 = vshrl.u32 %v287, 7
    %v289 = vsub.s32 0, %v288
    %v290 = vrot.slane %v285, %v289
    %v308 = vunpack.c.l.b16 %v269
    %v309 = vunpack.c.l.b16 %v270
    %v310 = vunpack.c.l.b16 %v271
    %v311 = vunpack.c.l.b16 %v272
    %v312 = vunpack.c.l.b16 %v273
    %v313 = vunpack.c.l.b16 %v274
    %v314 = vunpack.c.l.b16 %v275
    %v315 = vunpack.c.l.b16 %v276
    %v316 = vunpack.c.l.b16 %v277
    %v317 = vunpack.c.l.b16 %v278
    %v318 = vunpack.c.l.b16 %v279
    %v319 = vunpack.c.l.b16 %v280
    %v320 = vunpack.c.l.b16 %v281
    %v321 = vunpack.c.l.b16 %v282
    %v322 = vunpack.c.l.b16 %v283
    %v323 = vunpack.c.l.b16 %v284
    %v324 = vpack.c.b16 %v309, %v308
    %v325 = vpack.c.b16 %v311, %v310
    %v326 = vpack.c.b16 %v313, %v312
    %v327 = vpack.c.b16 %v315, %v314
    %v328 = vpack.c.b16 %v317, %v316
    %v329 = vpack.c.b16 %v319, %v318
    %v330 = vpack.c.b16 %v321, %v320
    %v331 = vpack.c.b16 %v323, %v322
    %340 = vmatprep.subr.bf16.mxu0 0
    %341 = vmatpush1.bf16.msra.mxu0 %v331
    %342 = vmatprep.subr.bf16.mxu0 0
    %343 = vmatpush1.bf16.msra.mxu0 %v330
    %344 = vmatprep.subr.bf16.mxu0 0
    %345 = vmatpush1.bf16.msra.mxu0 %v329
    %346 = vmatprep.subr.bf16.mxu0 0
    %347 = vmatpush1.bf16.msra.mxu0 %v328
    %348 = vmatprep.subr.bf16.mxu0 0
    %349 = vmatpush1.bf16.msra.mxu0 %v327
    %350 = vmatprep.subr.bf16.mxu0 0
    %351 = vmatpush1.bf16.msra.mxu0 %v326
    %352 = vmatprep.subr.bf16.mxu0 0
    %353 = vmatpush1.bf16.msra.mxu0 %v325
    %354 = vmatprep.subr.bf16.mxu0 0
    %355 = vmatpush1.bf16.msra.mxu0 %v324
    %356 = vmatprep.subr.bf16.mxu0 0
    %357 = vmatpush2.bf16.msra.mxu0 0
    %358 = vmatprep.subr.bf16.mxu0 0
    %359 = vmatpush2.bf16.msra.mxu0 0
    %360 = vmatprep.subr.bf16.mxu0 0
    %361 = vmatpush2.bf16.msra.mxu0 0
    %362 = vmatprep.subr.bf16.mxu0 0
    %363 = vmatpush2.bf16.msra.mxu0 0
    %364 = vmatprep.subr.bf16.mxu0 0
    %365 = vmatpush2.bf16.msra.mxu0 0
    %366 = vmatprep.subr.bf16.mxu0 0
    %367 = vmatpush2.bf16.msra.mxu0 0
    %368 = vmatprep.subr.bf16.mxu0 0
    %369 = vmatpush2.bf16.msra.mxu0 0
    %370 = vmatprep.subr.bf16.mxu0 0
    %371 = vmatpush2.bf16.msra.mxu0 0
    %372 = vmatprep.mubr.bf16.mxu0 0
    %373 = vmatmul.mubr.bf16.gmra.mxu0 %v265
    %v374 = vpop.f32.mrf.mxu0
    %v375 = vadd.f32 %v290, %v374
    %v376 = vpop.f32.mrf.mxu0
    %v377 = vpop.f32.mrf.mxu0
    %v378 = vadd.f32 %v290, %v377
    %v379 = vpop.f32.mrf.mxu0
    %380 = vmatprep.mubr.bf16.mxu0 0
    %381 = vmatmul.mubr.bf16.gmra.mxu0 %v266
    %v382 = vpop.f32.mrf.mxu0
    %v383 = vadd.f32 %v290, %v382
    %v384 = vpop.f32.mrf.mxu0
    %v385 = vpop.f32.mrf.mxu0
    %v386 = vadd.f32 %v290, %v385
    %v387 = vpop.f32.mrf.mxu0
    %388 = vmatprep.mubr.bf16.mxu0 0
    %389 = vmatmul.mubr.bf16.gmra.mxu0 %v267
    %v390 = vpop.f32.mrf.mxu0
    %v391 = vadd.f32 %v290, %v390
    %v392 = vpop.f32.mrf.mxu0
    %v393 = vpop.f32.mrf.mxu0
    %v394 = vadd.f32 %v290, %v393
    %v395 = vpop.f32.mrf.mxu0
    %396 = vmatprep.mubr.bf16.mxu0 0
    %397 = vmatmul.mubr.bf16.gmra.mxu0 %v268
    %v398 = vpop.f32.mrf.mxu0
    %v399 = vadd.f32 %v290, %v398
    %v400 = vpop.f32.mrf.mxu0
    %v401 = vpop.f32.mrf.mxu0
    %v402 = vadd.f32 %v290, %v401
    %v403 = vpop.f32.mrf.mxu0
    %404 = vdwg.mxu0
    %v405 = vadd.f32 %v375, %v68
    %v406 = vadd.f32 %v378, %v69
    %v407 = vadd.f32 %v383, %v70
    %v408 = vadd.f32 %v386, %v71
    %v409 = vadd.f32 %v391, %v72
    %v410 = vadd.f32 %v394, %v73
    %v411 = vadd.f32 %v399, %v74
    %v412 = vadd.f32 %v402, %v75
    %413 = vst [vmem:[#allocation9] sm:$0xff] %v405
    %414 = vst [vmem:[#allocation9 + $0x8] sm:$0xff] %v406
    %415 = vst [vmem:[#allocation9 + $0x10] sm:$0xff] %v407
    %416 = vst [vmem:[#allocation9 + $0x18] sm:$0xff] %v408
    %417 = vst [vmem:[#allocation9 + $0x20] sm:$0xff] %v409
    %418 = vst [vmem:[#allocation9 + $0x28] sm:$0xff] %v410
    %419 = vst [vmem:[#allocation9 + $0x30] sm:$0xff] %v411
    %420 = vst [vmem:[#allocation9 + $0x38] sm:$0xff] %v412
    // Predicated region
    $region38: #{tpu_custom_call.1} parent=1 // pred_check
      _
    $region39: #{tpu_custom_call.1} parent=1 // pred_check_branch
      %422 = sbr.rel (0) target = $region41
    $region40: #{tpu_custom_call.1} parent=1 // pred_region
      %s424 = ssub.s32 1024, 1024
      %425 = vsyncadd [#allocation5], %s424
      %s426 = sshll.u32 [#allocation9], 4
      %s427 = int_to_ptr.vmem [resolvable:$true] %s426
      %432 = dma.vmem_to_hbm [thread:$0]  %s427, 1024, %s6, [#allocation5], 128, 128, 8
    $region41: #{tpu_custom_call.1} parent=1 // pred_fallthru
      _
    // Predicated region
    $region42: #{tpu_custom_call.1} parent=1 // pred_check
      _
    $region43: #{tpu_custom_call.1} parent=1 // pred_check_branch
      %434 = sbr.rel (0) target = $region45
    $region44: #{tpu_custom_call.1} parent=1 // pred_region
      %435 = dma.done [#allocation5], 1024
    $region45: #{tpu_custom_call.1} parent=1 // pred_fallthru
      _
    %436 = vsyncpa [#allocation4], 1
    %437 = vsyncpa [#allocation7], 1
    %438 = vsyncpa [#allocation5], 1

</llo_original>
